<compile_context>
chip_gen: v7x
topology: tpu7x:2x2x1
jax: 0.10.0
libtpu: 0.0.40
codegen_flags: <defaults>
</compile_context>

<pallas_src>
from typing import NamedTuple, Optional

import jax
import jax.numpy as jnp
from jax.experimental import pallas as pl
from jax.experimental.pallas import tpu as pltpu


# ----------------------------- small helpers ------------------------------


def _cdiv(a, b):
    return -(-a // b)


def _round_up(x, m):
    return _cdiv(x, m) * m


def _choose_tile(dim, align, target):
    """Pick a tile (multiple of `align`) near `target` that minimizes padding.

    Returns (tile, padded_dim) with padded_dim == tile * num_blocks >= dim.
    Avoids the "dim just above a tile multiple => ~2x padding" trap by splitting
    the aligned dim into ceil(dim/target) equal-ish blocks.
    """
    dim_al = _round_up(dim, align)
    if dim_al <= target:
        return dim_al, dim_al
    nblocks = _cdiv(dim_al, target)
    tile = _round_up(_cdiv(dim_al, nblocks), align)
    return tile, tile * nblocks


# ------------------------------- kernels ----------------------------------


def _linear_kernel_noK(x_ref, w_ref, b_ref, o_ref):
    """Whole reduction in one tile: o = x @ w + b  (no K loop, no scratch)."""
    acc = jnp.dot(x_ref[...], w_ref[...], preferred_element_type=jnp.float32)
    o_ref[...] = (acc + b_ref[...].astype(jnp.float32)).astype(o_ref.dtype)


def _linear_kernel_K_f32out(x_ref, w_ref, b_ref, o_ref):
    """K-tiled path, f32 output: accumulate directly into the resident o block."""
    k = pl.program_id(2)

    @pl.when(k == 0)
    def _():
        o_ref[...] = jnp.broadcast_to(b_ref[...], o_ref.shape).astype(o_ref.dtype)

    o_ref[...] += jnp.dot(x_ref[...], w_ref[...], preferred_element_type=jnp.float32)


def _linear_kernel_K_scratch(x_ref, w_ref, b_ref, o_ref, acc_ref):
    """K-tiled path, non-f32 output: f32 scratch accumulator, cast on last step."""
    k = pl.program_id(2)

    @pl.when(k == 0)
    def _():
        acc_ref[...] = jnp.broadcast_to(b_ref[...], acc_ref.shape).astype(jnp.float32)

    acc_ref[...] += jnp.dot(x_ref[...], w_ref[...], preferred_element_type=jnp.float32)

    @pl.when(k == pl.num_programs(2) - 1)
    def _():
        o_ref[...] = acc_ref[...].astype(o_ref.dtype)


# --------------------------- parameter prepare ----------------------------


class LinearParams(NamedTuple):
    w_t: jax.Array        # [D_pad, C_pad]  (K, N) layout, padded, transposed once
    b2d: jax.Array        # [1, C_pad]      padded bias
    num_classes: int      # C (unpadded)
    input_dim: int        # D (unpadded)
    tn: int               # N tile
    tk: int               # K tile (== D_pad when the K axis is collapsed)


def prepare_linear_params(
    weight: jax.Array,
    bias: Optional[jax.Array],
    *,
    tn_target: int = 512,
    tk_target: int = 512,
    k_collapse_max: int = 2048,
) -> LinearParams:
    """One-time transpose + pad of the static nn.Linear parameters.

    weight: [C, D] (nn.Linear layout out_features x in_features), bias: [C] or None.
    """
    C, D = weight.shape
    if bias is None:
        bias = jnp.zeros((C,), weight.dtype)
    assert bias.shape == (C,)

    tn, C_pad = _choose_tile(C, 128, tn_target)

    D_al = _round_up(D, 128)
    if D_al <= k_collapse_max:
        tk, D_pad = D_al, D_al            # collapse K: single reduction tile
    else:
        tk, D_pad = _choose_tile(D, 128, tk_target)

    w_t = weight.T                         # [D, C], MXU-native [K, N]
    if (D_pad, C_pad) != (D, C):
        w_t = jnp.pad(w_t, ((0, D_pad - D), (0, C_pad - C)))
    b_p = bias if C_pad == C else jnp.pad(bias, (0, C_pad - C))
    return LinearParams(w_t, b_p.reshape(1, C_pad), C, D, tn, tk)


# ------------------------------- forward ----------------------------------


def linear_layer_forward(
    x: jax.Array,
    params: LinearParams,
    *,
    tm_target: int = 512,
    deep_weight_buffering: bool = False,   # opt-in: sweep for small-batch streaming
):
    """Pallas forward for LinearLayer: y = x @ W.T + b with x [B, D]."""
    assert x.ndim == 2, f"Expected 2D input, got shape {x.shape}"
    B, D = x.shape
    assert D == params.input_dim, f"input dim {D} != prepared dim {params.input_dim}"
    C = params.num_classes
    w_t, b2d = params.w_t, params.b2d
    D_pad, C_pad = w_t.shape
    tn, tk = params.tn, params.tk
    num_n = C_pad // tn
    num_k = D_pad // tk
    collapse_k = num_k == 1

    tm, B_pad = _choose_tile(B, 8, tm_target)
    num_m = B_pad // tm

    # v7x megacore: make sure the "parallel" axes have >=2 tiles when splittable,
    # otherwise one TensorCore idles.
    if num_m * num_n == 1:
        if B_pad >= 16:
            tm = _round_up(_cdiv(B_pad, 2), 8)
            num_m = 2
            B_pad = tm * 2
        elif C_pad % 256 == 0:
            tn = C_pad // 2
            num_n = 2

    x_p = x
    if (B_pad, D_pad) != (B, D):
        x_p = jnp.pad(x, ((0, B_pad - B), (0, D_pad - D)))  # zero K-padding is exact

    out_dtype = x.dtype
    itemsize = jnp.dtype(x.dtype).itemsize
    w_itemsize = jnp.dtype(w_t.dtype).itemsize

    # Realistic HBM traffic for the (m outer, n inner[, k innermost]) schedule:
    #   x read once if its block is constant over the inner axes, else num_n times;
    #   W read once per m-block (once total if its block index never changes).
    x_reads = 1 if (collapse_k or num_n == 1) else num_n
    w_reads = num_m
    cost = pl.CostEstimate(
        flops=2 * B_pad * D_pad * C_pad,
        transcendentals=0,
        bytes_accessed=int(
            x_reads * B_pad * D_pad * itemsize
            + w_reads * C_pad * D_pad * w_itemsize
            + B_pad * C_pad * itemsize
        ),
    )

    # VMEM budget: double-buffered input/output tiles (+ scratch), with headroom.
    use_scratch = (not collapse_k) and out_dtype != jnp.float32
    need = 2 * (
        tm * tk * itemsize
        + tk * tn * w_itemsize
        + tn * jnp.dtype(b2d.dtype).itemsize
        + tm * tn * itemsize
    ) + (tm * tn * 4 if use_scratch else 0)
    vmem_limit = int(min(max(need + (4 << 20), 32 << 20), 64 << 20))

    # Deeper pipelining on the streamed weight only helps when the weight block
    # actually changes often and compute per tile is short (small-batch regime).
    deep_w = deep_weight_buffering and num_m == 1 and num_n * num_k >= 3

    if collapse_k:
        grid = (num_m, num_n)
        dim_sem = ("parallel", "parallel")
        x_spec = pl.BlockSpec((tm, tk), lambda i, j: (i, 0))
        if deep_w:
            w_spec = pl.BlockSpec((tk, tn), lambda i, j: (0, j),
                                  pipeline_mode=pl.Buffered(3))
        else:
            w_spec = pl.BlockSpec((tk, tn), lambda i, j: (0, j))
        b_spec = pl.BlockSpec((1, tn), lambda i, j: (0, j))
        o_spec = pl.BlockSpec((tm, tn), lambda i, j: (i, j))
        kernel = _linear_kernel_noK
        scratch_shapes = []
    else:
        grid = (num_m, num_n, num_k)
        dim_sem = ("parallel", "parallel", "arbitrary")
        x_spec = pl.BlockSpec((tm, tk), lambda i, j, k: (i, k))
        if deep_w:
            w_spec = pl.BlockSpec((tk, tn), lambda i, j, k: (k, j),
                                  pipeline_mode=pl.Buffered(3))
        else:
            w_spec = pl.BlockSpec((tk, tn), lambda i, j, k: (k, j))
        b_spec = pl.BlockSpec((1, tn), lambda i, j, k: (0, j))
        o_spec = pl.BlockSpec((tm, tn), lambda i, j, k: (i, j))
        if out_dtype == jnp.float32:
            kernel = _linear_kernel_K_f32out
            scratch_shapes = []
        else:
            kernel = _linear_kernel_K_scratch
            scratch_shapes = [pltpu.VMEM((tm, tn), jnp.float32)]

    out = pl.pallas_call(
        kernel,
        out_shape=jax.ShapeDtypeStruct((B_pad, C_pad), out_dtype),
        grid_spec=pltpu.PrefetchScalarGridSpec(
            num_scalar_prefetch=0,
            grid=grid,
            in_specs=[x_spec, w_spec, b_spec],
            out_specs=o_spec,
            scratch_shapes=scratch_shapes,
        ),
        compiler_params=pltpu.CompilerParams(
            dimension_semantics=dim_sem,
            vmem_limit_bytes=vmem_limit,
        ),
        cost_estimate=cost,
    )(x_p, w_t, b2d)

    if (B_pad, C_pad) != (B, C):
        out = out[:B, :C]
    return out


def reference_forward(x, weight, bias):
    return x @ weight.T + bias


# --------------------------------- demo -----------------------------------

if __name__ == "__main__":
    key = jax.random.PRNGKey(0)

    def make_case(key, batch, input_dim, num_classes):
        k_x, k_w, k_b = jax.random.split(key, 3)
        x = jax.random.normal(k_x, (batch, input_dim), dtype=jnp.float32)
        # weight ~ N(0, 0.01) as in the module's build(); bias ~ nn.Linear default.
        w = 0.01 * jax.random.normal(k_w, (num_classes, input_dim), dtype=jnp.float32)
        bound = 1.0 / (input_dim ** 0.5)
        b = jax.random.uniform(k_b, (num_classes,), dtype=jnp.float32,
                               minval=-bound, maxval=bound)
        return x, w, b

    ok = True

    # Case 1: small shapes consistent with the module (K-collapsed fast path).
    k1, k2, k3 = jax.random.split(key, 3)
    x, w, b = make_case(k1, batch=8, input_dim=32, num_classes=16)
    params = prepare_linear_params(w, b)
    y = jax.block_until_ready(linear_layer_forward(x, params))
    ok &= bool(jnp.allclose(y, reference_forward(x, w, b), atol=1e-5, rtol=1e-5))
    ok &= y.shape == (8, 16)

    # Case 2: force the K-tiled (3-D grid) path with a small collapse threshold.
    x, w, b = make_case(k2, batch=8, input_dim=512, num_classes=16)
    params = prepare_linear_params(w, b, tk_target=128, k_collapse_max=128)
    y = jax.block_until_ready(linear_layer_forward(x, params))
    ok &= bool(jnp.allclose(y, reference_forward(x, w, b), atol=1e-4, rtol=1e-5))
    ok &= y.shape == (8, 16)

    # Case 3: exercises C/B padding + the v7x >=2-parallel-tile split.
    x, w, b = make_case(k3, batch=64, input_dim=256, num_classes=100)
    params = prepare_linear_params(w, b)
    y = jax.block_until_ready(linear_layer_forward(x, params))
    ok &= bool(jnp.allclose(y, reference_forward(x, w, b), atol=1e-4, rtol=1e-5))
    ok &= y.shape == (64, 100)

    assert ok, "Pallas LinearLayer forward does not match the reference"
    print("KERNEL_OK")
</pallas_src>

<mosaic_0001>
module attributes {stable_mosaic.version = 11 : i64} {
  func.func @_linear_kernel_noK(%arg0: i32, %arg1: i32, %arg2: memref<8x128xf32, #tpu.memory_space<vmem>>, %arg3: memref<128x128xf32, #tpu.memory_space<vmem>>, %arg4: memref<1x128xf32, #tpu.memory_space<vmem>>, %arg5: memref<8x128xf32, #tpu.memory_space<vmem>>) attributes {dimension_semantics = [#tpu.dimension_semantics<parallel>, #tpu.dimension_semantics<parallel>], iteration_bounds = array<i64: 1, 1>, scalar_prefetch = 0 : i64, scratch_operands = 0 : i64, tpu.core_type = #tpu.core_type<tc>, window_params = [{transform_indices = @transform_0, window_bounds = array<i64: 8, 128>}, {transform_indices = @transform_1, window_bounds = array<i64: 128, 128>}, {transform_indices = @transform_2, window_bounds = array<i64: 1, 128>}, {transform_indices = @transform_3, window_bounds = array<i64: 8, 128>}]} {
    %c0 = arith.constant 0 : index
    %c0_0 = arith.constant 0 : index
    %0 = vector.load %arg2[%c0, %c0_0] : memref<8x128xf32, #tpu.memory_space<vmem>>, vector<8x128xf32>
    %c0_1 = arith.constant 0 : index
    %c0_2 = arith.constant 0 : index
    %1 = vector.load %arg3[%c0_1, %c0_2] : memref<128x128xf32, #tpu.memory_space<vmem>>, vector<128x128xf32>
    %cst = arith.constant dense<0.000000e+00> : vector<8x128xf32>
    %2 = tpu.matmul %0, %1, %cst {dimension_numbers = #tpu.dot_dimension_numbers<[1], [0], [0], [1], [0, 0, 1, 1], [], []>} : vector<8x128xf32>, vector<128x128xf32>, vector<8x128xf32> -> vector<8x128xf32>
    %c0_3 = arith.constant 0 : index
    %c0_4 = arith.constant 0 : index
    %3 = vector.load %arg4[%c0_3, %c0_4] : memref<1x128xf32, #tpu.memory_space<vmem>>, vector<1x128xf32>
    %4 = vector.broadcast %3 : vector<1x128xf32> to vector<8x128xf32>
    %5 = arith.addf %2, %4 : vector<8x128xf32>
    %c0_5 = arith.constant 0 : index
    %c0_6 = arith.constant 0 : index
    %6 = vector.load %arg5[%c0_5, %c0_6] : memref<8x128xf32, #tpu.memory_space<vmem>>, vector<8x128xf32>
    tpu.vector_store %arg5[%c0_5, %c0_6], %5 {strides = array<i32>} : memref<8x128xf32, #tpu.memory_space<vmem>>, vector<8x128xf32>,
    return
  }
  func.func @transform_0(%arg0: i32, %arg1: i32) -> (i32, i32) {
    %c0_i32 = arith.constant 0 : i32
    %c0_i32_0 = arith.constant 0 : i32
    return %arg0, %c0_i32 : i32, i32
  }
  func.func @transform_1(%arg0: i32, %arg1: i32) -> (i32, i32) {
    %c0_i32 = arith.constant 0 : i32
    %c0_i32_0 = arith.constant 0 : i32
    return %c0_i32, %arg1 : i32, i32
  }
  func.func @transform_2(%arg0: i32, %arg1: i32) -> (i32, i32) {
    %c0_i32 = arith.constant 0 : i32
    %c0_i32_0 = arith.constant 0 : i32
    return %c0_i32, %arg1 : i32, i32
  }
  func.func @transform_3(%arg0: i32, %arg1: i32) -> (i32, i32) {
    %c0_i32 = arith.constant 0 : i32
    return %arg0, %arg1 : i32, i32
  }
}

</mosaic_0001>

<llo_original>
// kernel: tpu_custom_call.1
$region0: #{tpu_custom_call.1}
  #allocation0 [shape = 'u32[]', space=smem, size = 0x4, offset = 0x4, fixed_abs, tag = 'smem constant byte address 0x4 - core index']
  #allocation1 [shape = 'u32[144,128]{1,0:T(1,128)}', space=vmem, size = 0x12000, scoped, tag = 'internal scratch']
  %s0 = inlined_call_operand.hbm [shape: f32[8,128], index: 0, kind: input, shape index: {}]
  %s1 = inlined_call_operand.hbm [shape: f32[128,128], index: 1, kind: input, shape index: {}]
  %s2 = inlined_call_operand.vmem [shape: f32[1,128], index: 2, kind: input, shape index: {}]
  %s3 = inlined_call_operand.hbm [shape: f32[8,128], index: 3, kind: output, shape index: {}]
  %s4 = sld [smem:[#allocation0]]
  $region30: #{tpu_custom_call.1} parent=0
    _
  %s6 = ssub.s32 1, %s4
  %s7 = scalar_select 0, %s6, %s4
  $region1: #{tpu_custom_call.1} parent=0
    #allocation2 [shape = 'u8[4096]{0}', space=vmem, size = 0x1000, scoped, tag = 'input window, operand 0, single buffered']
    #allocation3 [shape = 's32[1]{0}', space=sflag, size = 0x4, scoped, tag = 'scoped memory for tpu_custom_call.1']
    #allocation4 [shape = 's32[1]{0}', space=sflag, size = 0x4, scoped, tag = 'scoped memory for tpu_custom_call.1']
    #allocation5 [shape = 'u8[65536]{0}', space=vmem, size = 0x10000, scoped, tag = 'input window, operand 1, single buffered']
    #allocation6 [shape = 's32[1]{0}', space=sflag, size = 0x4, scoped, tag = 'scoped memory for tpu_custom_call.1']
    #allocation7 [shape = 'u8[4096]{0}', space=vmem, size = 0x1000, scoped, tag = 'output window, operand 0, single buffered']
    %8 = vsyncpa [#allocation3], 0
    %9 = vsyncpa [#allocation6], 0
    %10 = vsyncpa [#allocation4], 0
    // Predicated region
    $region2: #{tpu_custom_call.1} parent=1 // pred_check
      _
    $region3: #{tpu_custom_call.1} parent=1 // pred_check_branch
      %12 = sbr.rel (0) target = $region5
    $region4: #{tpu_custom_call.1} parent=1 // pred_region
      %s14 = ssub.s32 128, 128
      %15 = vsyncadd [#allocation3], %s14
      %s17 = sshll.u32 [#allocation2], 4
      %s18 = int_to_ptr.vmem [resolvable:$true] %s17
      %20 = dma.hbm_to_vmem [thread:$0]  %s0, 128, %s18, [#allocation3]
    $region5: #{tpu_custom_call.1} parent=1 // pred_fallthru
      _
    // Predicated region
    $region6: #{tpu_custom_call.1} parent=1 // pred_check
      _
    $region7: #{tpu_custom_call.1} parent=1 // pred_check_branch
      %22 = sbr.rel (0) target = $region9
    $region8: #{tpu_custom_call.1} parent=1 // pred_region
      %s24 = ssub.s32 2048, 2048
      %25 = vsyncadd [#allocation6], %s24
      %s26 = sshll.u32 [#allocation5], 4
      %s27 = int_to_ptr.vmem [resolvable:$true] %s26
      %32 = dma.hbm_to_vmem [thread:$0]  %s1, 2048, %s27, [#allocation6], 128, 128, 8
    $region9: #{tpu_custom_call.1} parent=1 // pred_fallthru
      _
    // Predicated region
    $region10: #{tpu_custom_call.1} parent=1 // pred_check
      _
    $region11: #{tpu_custom_call.1} parent=1 // pred_check_branch
      %34 = sbr.rel (0) target = $region13
    $region12: #{tpu_custom_call.1} parent=1 // pred_region
      _
    $region13: #{tpu_custom_call.1} parent=1 // pred_fallthru
      _
    // Predicated region
    $region14: #{tpu_custom_call.1} parent=1 // pred_check
      _
    $region15: #{tpu_custom_call.1} parent=1 // pred_check_branch
      %36 = sbr.rel (0) target = $region17
    $region16: #{tpu_custom_call.1} parent=1 // pred_region
      %37 = dma.done [#allocation3], 128
    $region17: #{tpu_custom_call.1} parent=1 // pred_fallthru
      _
    // Predicated region
    $region18: #{tpu_custom_call.1} parent=1 // pred_check
      _
    $region19: #{tpu_custom_call.1} parent=1 // pred_check_branch
      %39 = sbr.rel (0) target = $region21
    $region20: #{tpu_custom_call.1} parent=1 // pred_region
      %40 = dma.done [#allocation6], 2048
    $region21: #{tpu_custom_call.1} parent=1 // pred_fallthru
      _
    %v41 = vld [vmem:[#allocation2] sm:$0xff]
    %v42 = vld [vmem:[#allocation5] sm:$0xff]
    %v43 = vld [vmem:[#allocation5 + $0x8] sm:$0xff]
    %v44 = vld [vmem:[#allocation5 + $0x10] sm:$0xff]
    %v45 = vld [vmem:[#allocation5 + $0x18] sm:$0xff]
    %v46 = vld [vmem:[#allocation5 + $0x20] sm:$0xff]
    %v47 = vld [vmem:[#allocation5 + $0x28] sm:$0xff]
    %v48 = vld [vmem:[#allocation5 + $0x30] sm:$0xff]
    %v49 = vld [vmem:[#allocation5 + $0x38] sm:$0xff]
    %v50 = vld [vmem:[#allocation5 + $0x40] sm:$0xff]
    %v51 = vld [vmem:[#allocation5 + $0x48] sm:$0xff]
    %v52 = vld [vmem:[#allocation5 + $0x50] sm:$0xff]
    %v53 = vld [vmem:[#allocation5 + $0x58] sm:$0xff]
    %v54 = vld [vmem:[#allocation5 + $0x60] sm:$0xff]
    %v55 = vld [vmem:[#allocation5 + $0x68] sm:$0xff]
    %v56 = vld [vmem:[#allocation5 + $0x70] sm:$0xff]
    %v57 = vld [vmem:[#allocation5 + $0x78] sm:$0xff]
    %v58 = vld [vmem:[%s2] sm:$0x1]
    %v60 = vlaneseq
    %v61 = vshrl.u32 %v60, 7
    %v62 = vsub.s32 0, %v61
    %v63 = vrot.slane %v58, %v62
    %65 = vmatprep.subr.mxu0 0.0
    %66 = vmatpush1.msra.mxu0 %v42
    %67 = vmatprep.subr.mxu0 0.0
    %68 = vmatpush1.msra.mxu0 %v43
    %69 = vmatprep.subr.mxu0 0.0
    %70 = vmatpush1.msra.mxu0 %v44
    %71 = vmatprep.subr.mxu0 0.0
    %72 = vmatpush1.msra.mxu0 %v45
    %73 = vmatprep.subr.mxu0 0.0
    %74 = vmatpush1.msra.mxu0 %v46
    %75 = vmatprep.subr.mxu0 0.0
    %76 = vmatpush1.msra.mxu0 %v47
    %77 = vmatprep.subr.mxu0 0.0
    %78 = vmatpush1.msra.mxu0 %v48
    %79 = vmatprep.subr.mxu0 0.0
    %80 = vmatpush1.msra.mxu0 %v49
    %81 = vmatprep.subr.mxu0 0.0
    %82 = vmatpush1.msra.mxu0 %v50
    %83 = vmatprep.subr.mxu0 0.0
    %84 = vmatpush1.msra.mxu0 %v51
    %85 = vmatprep.subr.mxu0 0.0
    %86 = vmatpush1.msra.mxu0 %v52
    %87 = vmatprep.subr.mxu0 0.0
    %88 = vmatpush1.msra.mxu0 %v53
    %89 = vmatprep.subr.mxu0 0.0
    %90 = vmatpush1.msra.mxu0 %v54
    %91 = vmatprep.subr.mxu0 0.0
    %92 = vmatpush1.msra.mxu0 %v55
    %93 = vmatprep.subr.mxu0 0.0
    %94 = vmatpush1.msra.mxu0 %v56
    %95 = vmatprep.subr.mxu0 0.0
    %96 = vmatpush1.msra.mxu0 %v57
    %97 = vmatprep.subr.mxu0 0.0
    %98 = vmatpush1.msra.mxu0 0.0
    %99 = vmatprep.subr.mxu0 0.0
    %100 = vmatpush1.msra.mxu0 0.0
    %101 = vmatprep.subr.mxu0 0.0
    %102 = vmatpush1.msra.mxu0 0.0
    %103 = vmatprep.subr.mxu0 0.0
    %104 = vmatpush1.msra.mxu0 0.0
    %105 = vmatprep.subr.mxu0 0.0
    %106 = vmatpush1.msra.mxu0 0.0
    %107 = vmatprep.subr.mxu0 0.0
    %108 = vmatpush1.msra.mxu0 0.0
    %109 = vmatprep.subr.mxu0 0.0
    %110 = vmatpush1.msra.mxu0 0.0
    %111 = vmatprep.subr.mxu0 0.0
    %112 = vmatpush1.msra.mxu0 0.0
    %113 = vmatprep.subr.mxu0 0.0
    %114 = vmatpush1.msra.mxu0 0.0
    %115 = vmatprep.subr.mxu0 0.0
    %116 = vmatpush1.msra.mxu0 0.0
    %117 = vmatprep.subr.mxu0 0.0
    %118 = vmatpush1.msra.mxu0 0.0
    %119 = vmatprep.subr.mxu0 0.0
    %120 = vmatpush1.msra.mxu0 0.0
    %121 = vmatprep.subr.mxu0 0.0
    %122 = vmatpush1.msra.mxu0 0.0
    %123 = vmatprep.subr.mxu0 0.0
    %124 = vmatpush1.msra.mxu0 0.0
    %125 = vmatprep.subr.mxu0 0.0
    %126 = vmatpush1.msra.mxu0 0.0
    %127 = vmatprep.subr.mxu0 0.0
    %128 = vmatpush1.msra.mxu0 0.0
    %129 = vmatprep.mubr.f32.mxu0 0.0
    %130 = vmatmul.mubr.f32.gmra.mrb[0].mxu0 %v41
    %v131 = vpop.f32.mrb[0].mxu0
    %v132 = vadd.f32 %v63, %v131
    %v133 = vpop.f32.mrb[0].mxu0
    %134 = vdwg.mxu0
    %135 = vst [vmem:[#allocation7] sm:$0xff] %v132
    // Predicated region
    $region22: #{tpu_custom_call.1} parent=1 // pred_check
      _
    $region23: #{tpu_custom_call.1} parent=1 // pred_check_branch
      %137 = sbr.rel (0) target = $region25
    $region24: #{tpu_custom_call.1} parent=1 // pred_region
      %s139 = ssub.s32 128, 128
      %140 = vsyncadd [#allocation4], %s139
      %s142 = sshll.u32 [#allocation7], 4
      %s143 = int_to_ptr.vmem [resolvable:$true] %s142
      %145 = dma.vmem_to_hbm [thread:$0]  %s143, 128, %s3, [#allocation4]
    $region25: #{tpu_custom_call.1} parent=1 // pred_fallthru
      _
    // Predicated region
    $region26: #{tpu_custom_call.1} parent=1 // pred_check
      _
    $region27: #{tpu_custom_call.1} parent=1 // pred_check_branch
      %147 = sbr.rel (0) target = $region29
    $region28: #{tpu_custom_call.1} parent=1 // pred_region
      %148 = dma.done [#allocation4], 128
    $region29: #{tpu_custom_call.1} parent=1 // pred_fallthru
      _
    %149 = vsyncpa [#allocation3], 1
    %150 = vsyncpa [#allocation6], 1
    %151 = vsyncpa [#allocation4], 1

</llo_original>
